<compile_context>
chip_gen: v7x
topology: tpu7x:2x2x1
jax: 0.10.0
libtpu: 0.0.40
codegen_flags: <defaults>
</compile_context>

<pallas_src>
import math

import jax
import jax.numpy as jnp
from jax.experimental import pallas as pl
from jax.experimental.pallas import tpu as pltpu


_INV_SQRT2 = 1.0 / math.sqrt(2.0)


def _ff_kernel(x_ref, w1_ref, b1_ref, w2_ref, b2_ref, o_ref, acc_ref):
    """Grid = (M//tm, Hf//tk).  Axis 0: row tiles (parallel).  Axis 1: hidden-dim
    reduction tiles (arbitrary) accumulated into an f32 VMEM scratch."""
    k = pl.program_id(1)

    @pl.when(k == 0)
    def _():
        acc_ref[...] = jnp.zeros_like(acc_ref)

    # linear1 slice: (tm, D) @ (D, tk) on the MXU with bf16 inputs, f32 accum.
    h = jnp.dot(x_ref[...].astype(jnp.bfloat16),
                w1_ref[...].astype(jnp.bfloat16),
                preferred_element_type=jnp.float32)
    h = h + b1_ref[...].astype(jnp.float32)

    # exact GELU (erf) to match nn.GELU() default.
    h = 0.5 * h * (1.0 + jax.lax.erf(h * jnp.float32(_INV_SQRT2)))

    # partial linear2: acc += gelu(x @ W1[:, k-tile]) @ W2[k-tile, :]
    acc_ref[...] += jnp.dot(h.astype(jnp.bfloat16),
                            w2_ref[...].astype(jnp.bfloat16),
                            preferred_element_type=jnp.float32)

    @pl.when(k == pl.num_programs(1) - 1)
    def _():
        o_ref[...] = (acc_ref[...] + b2_ref[...].astype(jnp.float32)).astype(o_ref.dtype)


def feed_forward(x, w1, b1, w2, b2, *, tm=256, tk=256):
    """y = GELU(x @ w1 + b1) @ w2 + b2  (dropout p=0 is the identity).

    x: (..., D); w1: (D, Hf); b1: (Hf,); w2: (Hf, D); b2: (D,).
    """
    orig_shape = x.shape
    D = orig_shape[-1]
    Hf = w1.shape[1]
    x2 = x.reshape(-1, D)
    M = x2.shape[0]

    # Block sizes: full extent is always legal; otherwise stay on (8,128) multiples.
    if M % tm != 0 or tm % 8 != 0:
        tm = M
    if Hf % tk != 0 or tk % 128 != 0:
        tk = Hf

    b1_2 = b1.reshape(1, Hf)
    b2_2 = b2.reshape(1, D)

    grid = (M // tm, Hf // tk)
    itemsize = jnp.dtype(x.dtype).itemsize
    cost = pl.CostEstimate(
        flops=4 * M * D * Hf,              # two (M,D,Hf) matmuls
        transcendentals=M * Hf,            # erf per hidden activation
        bytes_accessed=(x2.size + w1.size + w2.size + b1.size + b2.size + M * D)
        * itemsize,
    )

    out = pl.pallas_call(
        _ff_kernel,
        out_shape=jax.ShapeDtypeStruct((M, D), x.dtype),
        grid_spec=pltpu.PrefetchScalarGridSpec(
            num_scalar_prefetch=0,
            grid=grid,
            in_specs=[
                pl.BlockSpec((tm, D), lambda i, k: (i, 0)),   # x row tile
                pl.BlockSpec((D, tk), lambda i, k: (0, k)),   # W1 column slice
                pl.BlockSpec((1, tk), lambda i, k: (0, k)),   # b1 slice
                pl.BlockSpec((tk, D), lambda i, k: (k, 0)),   # W2 row slice
                pl.BlockSpec((1, D), lambda i, k: (0, 0)),    # b2
            ],
            out_specs=pl.BlockSpec((tm, D), lambda i, k: (i, 0)),
            scratch_shapes=[pltpu.VMEM((tm, D), jnp.float32)],
        ),
        compiler_params=pltpu.CompilerParams(
            dimension_semantics=("parallel", "arbitrary"),
            vmem_limit_bytes=64 << 20,
        ),
        cost_estimate=cost,
    )(x2, w1, b1_2, w2, b2_2)
    return out.reshape(orig_shape)


# ----------------------------------------------------------------------------
# Pure-JAX f32 reference (mirrors the PyTorch forward with dropout p=0).
# ----------------------------------------------------------------------------
def feed_forward_ref(x, w1, b1, w2, b2):
    h = x @ w1 + b1
    h = jax.nn.gelu(h, approximate=False)
    return h @ w2 + b2


if __name__ == "__main__":
    # Small, TPU-friendly shapes consistent with the module: (B, S, D) tokens,
    # embed dim = 128, hidden dim = 512.
    B, S, D, Hf = 2, 8, 128, 512
    key = jax.random.PRNGKey(0)
    kx, kw1, kw2, kb1, kb2 = jax.random.split(key, 5)
    x = jax.random.normal(kx, (B, S, D), jnp.float32)
    w1 = (0.02 * jax.random.normal(kw1, (D, Hf))).astype(jnp.float32)
    b1 = (0.02 * jax.random.normal(kb1, (Hf,))).astype(jnp.float32)
    w2 = (0.02 * jax.random.normal(kw2, (Hf, D))).astype(jnp.float32)
    b2 = (0.02 * jax.random.normal(kb2, (D,))).astype(jnp.float32)

    out = feed_forward(x, w1, b1, w2, b2)
    out = jax.block_until_ready(out)

    ref = feed_forward_ref(x, w1, b1, w2, b2)
    assert out.shape == ref.shape == (B, S, D)
    max_err = jnp.max(jnp.abs(out - ref))
    # bf16 MXU inputs vs. f32 reference -> bf16-level tolerance.
    assert jnp.allclose(out, ref, atol=1e-2, rtol=1e-2), f"max abs err = {max_err}"
    print("KERNEL_OK")
</pallas_src>

<mosaic_0001>
module attributes {stable_mosaic.version = 11 : i64} {
  func.func @_ff_kernel(%arg0: i32, %arg1: i32, %arg2: memref<16x128xf32, #tpu.memory_space<vmem>>, %arg3: memref<128x256xf32, #tpu.memory_space<vmem>>, %arg4: memref<1x256xf32, #tpu.memory_space<vmem>>, %arg5: memref<256x128xf32, #tpu.memory_space<vmem>>, %arg6: memref<1x128xf32, #tpu.memory_space<vmem>>, %arg7: memref<16x128xf32, #tpu.memory_space<vmem>>, %arg8: memref<16x128xf32, #tpu.memory_space<vmem>>) attributes {dimension_semantics = [#tpu.dimension_semantics<parallel>, #tpu.dimension_semantics<arbitrary>], iteration_bounds = array<i64: 1, 2>, scalar_prefetch = 0 : i64, scratch_operands = 1 : i64, tpu.core_type = #tpu.core_type<tc>, window_params = [{transform_indices = @transform_0, window_bounds = array<i64: 16, 128>}, {transform_indices = @transform_1, window_bounds = array<i64: 128, 256>}, {transform_indices = @transform_2, window_bounds = array<i64: 1, 256>}, {transform_indices = @transform_3, window_bounds = array<i64: 256, 128>}, {pipeline_mode = #tpu.pipeline_mode<synchronous>, transform_indices = @transform_4, window_bounds = array<i64: 1, 128>}, {transform_indices = @transform_5, window_bounds = array<i64: 16, 128>}]} {
    %c0_i32 = arith.constant 0 : i32
    %0 = arith.cmpi eq, %arg1, %c0_i32 : i32
    %1 = arith.extui %0 : i1 to i32
    %c0_i32_0 = arith.constant 0 : i32
    %2 = arith.cmpi ne, %1, %c0_i32_0 : i32
    scf.if %2 {
      %cst_17 = arith.constant 0.000000e+00 : f32
      %29 = vector.broadcast %cst_17 : f32 to vector<16x128xf32>
      %c0_18 = arith.constant 0 : index
      %c0_19 = arith.constant 0 : index
      %30 = vector.load %arg8[%c0_18, %c0_19] : memref<16x128xf32, #tpu.memory_space<vmem>>, vector<16x128xf32>
      tpu.vector_store %arg8[%c0_18, %c0_19], %29 {strides = array<i32>} : memref<16x128xf32, #tpu.memory_space<vmem>>, vector<16x128xf32>,
    } else {
    }
    %c0 = arith.constant 0 : index
    %c0_1 = arith.constant 0 : index
    %3 = vector.load %arg2[%c0, %c0_1] : memref<16x128xf32, #tpu.memory_space<vmem>>, vector<16x128xf32>
    %4 = arith.truncf %3 : vector<16x128xf32> to vector<16x128xbf16>
    %c0_2 = arith.constant 0 : index
    %c0_3 = arith.constant 0 : index
    %5 = vector.load %arg3[%c0_2, %c0_3] : memref<128x256xf32, #tpu.memory_space<vmem>>, vector<128x256xf32>
    %6 = arith.truncf %5 : vector<128x256xf32> to vector<128x256xbf16>
    %cst = arith.constant dense<0.000000e+00> : vector<16x256xf32>
    %7 = tpu.matmul %4, %6, %cst {dimension_numbers = #tpu.dot_dimension_numbers<[1], [0], [0], [1], [0, 0, 1, 1], [], []>} : vector<16x128xbf16>, vector<128x256xbf16>, vector<16x256xf32> -> vector<16x256xf32>
    %c0_4 = arith.constant 0 : index
    %c0_5 = arith.constant 0 : index
    %8 = vector.load %arg4[%c0_4, %c0_5] : memref<1x256xf32, #tpu.memory_space<vmem>>, vector<1x256xf32>
    %9 = vector.broadcast %8 : vector<1x256xf32> to vector<16x256xf32>
    %10 = arith.addf %7, %9 : vector<16x256xf32>
    %cst_6 = arith.constant 5.000000e-01 : f32
    %11 = vector.broadcast %cst_6 : f32 to vector<16x256xf32>
    %12 = arith.mulf %11, %10 : vector<16x256xf32>
    %cst_7 = arith.constant 0.707106769 : f32
    %13 = vector.broadcast %cst_7 : f32 to vector<16x256xf32>
    %14 = arith.mulf %10, %13 : vector<16x256xf32>
    %15 = math.erf %14 : vector<16x256xf32>
    %cst_8 = arith.constant 1.000000e+00 : f32
    %16 = vector.broadcast %cst_8 : f32 to vector<16x256xf32>
    %17 = arith.addf %16, %15 : vector<16x256xf32>
    %18 = arith.mulf %12, %17 : vector<16x256xf32>
    %c0_9 = arith.constant 0 : index
    %c0_10 = arith.constant 0 : index
    %19 = vector.load %arg8[%c0_9, %c0_10] : memref<16x128xf32, #tpu.memory_space<vmem>>, vector<16x128xf32>
    %20 = arith.truncf %18 : vector<16x256xf32> to vector<16x256xbf16>
    %c0_11 = arith.constant 0 : index
    %c0_12 = arith.constant 0 : index
    %21 = vector.load %arg5[%c0_11, %c0_12] : memref<256x128xf32, #tpu.memory_space<vmem>>, vector<256x128xf32>
    %22 = arith.truncf %21 : vector<256x128xf32> to vector<256x128xbf16>
    %cst_13 = arith.constant dense<0.000000e+00> : vector<16x128xf32>
    %23 = tpu.matmul %20, %22, %cst_13 {dimension_numbers = #tpu.dot_dimension_numbers<[1], [0], [0], [1], [0, 0, 1, 1], [], []>} : vector<16x256xbf16>, vector<256x128xbf16>, vector<16x128xf32> -> vector<16x128xf32>
    %24 = arith.addf %19, %23 : vector<16x128xf32>
    %c0_14 = arith.constant 0 : index
    %c0_15 = arith.constant 0 : index
    %25 = vector.load %arg8[%c0_14, %c0_15] : memref<16x128xf32, #tpu.memory_space<vmem>>, vector<16x128xf32>
    tpu.vector_store %arg8[%c0_14, %c0_15], %24 {strides = array<i32>} : memref<16x128xf32, #tpu.memory_space<vmem>>, vector<16x128xf32>,
    %c1_i32 = arith.constant 1 : i32
    %26 = arith.cmpi eq, %arg1, %c1_i32 : i32
    %27 = arith.extui %26 : i1 to i32
    %c0_i32_16 = arith.constant 0 : i32
    %28 = arith.cmpi ne, %27, %c0_i32_16 : i32
    scf.if %28 {
      %c0_17 = arith.constant 0 : index
      %c0_18 = arith.constant 0 : index
      %29 = vector.load %arg8[%c0_17, %c0_18] : memref<16x128xf32, #tpu.memory_space<vmem>>, vector<16x128xf32>
      %c0_19 = arith.constant 0 : index
      %c0_20 = arith.constant 0 : index
      %30 = vector.load %arg6[%c0_19, %c0_20] : memref<1x128xf32, #tpu.memory_space<vmem>>, vector<1x128xf32>
      %31 = vector.broadcast %30 : vector<1x128xf32> to vector<16x128xf32>
      %32 = arith.addf %29, %31 : vector<16x128xf32>
      %c0_21 = arith.constant 0 : index
      %c0_22 = arith.constant 0 : index
      %33 = vector.load %arg7[%c0_21, %c0_22] : memref<16x128xf32, #tpu.memory_space<vmem>>, vector<16x128xf32>
      tpu.vector_store %arg7[%c0_21, %c0_22], %32 {strides = array<i32>} : memref<16x128xf32, #tpu.memory_space<vmem>>, vector<16x128xf32>,
    } else {
    }
    return
  }
  func.func @transform_0(%arg0: i32, %arg1: i32) -> (i32, i32) {
    %c0_i32 = arith.constant 0 : i32
    %c0_i32_0 = arith.constant 0 : i32
    return %arg0, %c0_i32 : i32, i32
  }
  func.func @transform_1(%arg0: i32, %arg1: i32) -> (i32, i32) {
    %c0_i32 = arith.constant 0 : i32
    %c0_i32_0 = arith.constant 0 : i32
    return %c0_i32, %arg1 : i32, i32
  }
  func.func @transform_2(%arg0: i32, %arg1: i32) -> (i32, i32) {
    %c0_i32 = arith.constant 0 : i32
    %c0_i32_0 = arith.constant 0 : i32
    return %c0_i32, %arg1 : i32, i32
  }
  func.func @transform_3(%arg0: i32, %arg1: i32) -> (i32, i32) {
    %c0_i32 = arith.constant 0 : i32
    %c0_i32_0 = arith.constant 0 : i32
    return %arg1, %c0_i32 : i32, i32
  }
  func.func @transform_4(%arg0: i32, %arg1: i32) -> (i32, i32) {
    %c0_i32 = arith.constant 0 : i32
    %c0_i32_0 = arith.constant 0 : i32
    %c0_i32_1 = arith.constant 0 : i32
    return %c0_i32, %c0_i32_0 : i32, i32
  }
  func.func @transform_5(%arg0: i32, %arg1: i32) -> (i32, i32) {
    %c0_i32 = arith.constant 0 : i32
    %c0_i32_0 = arith.constant 0 : i32
    return %arg0, %c0_i32 : i32, i32
  }
}

</mosaic_0001>

<llo_original>
// kernel: tpu_custom_call.1
$region0: #{tpu_custom_call.1}
  #allocation0 [shape = 'u32[]', space=smem, size = 0x4, offset = 0x4, fixed_abs, tag = 'smem constant byte address 0x4 - core index']
  #allocation1 [shape = 'u32[144,128]{1,0:T(1,128)}', space=vmem, size = 0x12000, scoped, tag = 'internal scratch']
  #allocation2 [shape = 'f32[16,128]{1,0:T(8,128)}', space=vmem, size = 0x2000, scoped, tag = 'scratch operand']
  %s0 = inlined_call_operand.hbm [shape: f32[16,128], index: 0, kind: input, shape index: {}]
  %s1 = inlined_call_operand.hbm [shape: f32[128,512], index: 1, kind: input, shape index: {}]
  %s2 = inlined_call_operand.hbm [shape: f32[1,512], index: 2, kind: input, shape index: {}]
  %s3 = inlined_call_operand.hbm [shape: f32[512,128], index: 3, kind: input, shape index: {}]
  %s4 = inlined_call_operand.hbm [shape: f32[1,128], index: 4, kind: input, shape index: {}]
  %s5 = inlined_call_operand.hbm [shape: f32[16,128], index: 5, kind: output, shape index: {}]
  %s6 = sld [smem:[#allocation0]]
  $region81: #{tpu_custom_call.1} parent=0
    _
  %s8 = ssub.s32 1, %s6
  %s9 = scalar_select 0, %s8, %s6
  $region1: #{tpu_custom_call.1} parent=0
    #allocation3 [shape = 'u8[8192]{0}', space=vmem, size = 0x2000, scoped, tag = 'input window, operand 0, single buffered']
    #allocation4 [shape = 's32[2]{0}', space=sflag, size = 0x8, scoped, tag = 'scoped memory for tpu_custom_call.1']
    #allocation5 [shape = 's32[2]{0}', space=sflag, size = 0x8, scoped, tag = 'scoped memory for tpu_custom_call.1']
    #allocation6 [shape = 'u8[262144]{0}', space=vmem, size = 0x40000, scoped, tag = 'input window, operand 1']
    #allocation7 [shape = 's32[2]{0}', space=sflag, size = 0x8, scoped, tag = 'scoped memory for tpu_custom_call.1']
    #allocation8 [shape = 'u8[2048]{0}', space=vmem, size = 0x800, scoped, tag = 'input window, operand 2']
    #allocation9 [shape = 'u8[262144]{0}', space=vmem, size = 0x40000, scoped, tag = 'input window, operand 3']
    #allocation10 [shape = 's32[2]{0}', space=sflag, size = 0x8, scoped, tag = 'scoped memory for tpu_custom_call.1']
    #allocation11 [shape = 'u8[512]{0}', space=vmem, size = 0x400, scoped, tag = 'input window, operand 4, single buffered']
    #allocation12 [shape = 'u8[8192]{0}', space=vmem, size = 0x2000, scoped, tag = 'output window, operand 0, single buffered']
    %10 = vsyncpa [#allocation4], 0
    %11 = vsyncpa [#allocation7], 0
    %s12 = scalar_lea.sflag [#allocation7], 1
    %13 = vsyncpa %s12, 0
    %14 = vsyncpa [#allocation10], 0
    %s15 = scalar_lea.sflag [#allocation10], 1
    %16 = vsyncpa %s15, 0
    %17 = vsyncpa [#allocation5], 0
    loop: start=0, step=1, limit=4
    $region2: #{tpu_custom_call.1} parent=1 // loop_pre_header
      _
    $region3: #{tpu_custom_call.1} parent=1 // loop_header
      %s19 = sphi 0, %s23
      %p20 = scmp.ge.s32.totalorder %s19, 4
      %s26 = sphi 0, %s38
      %s27 = sphi 0, %s34
      %s28 = sphi 0, %s26
      %s29 = sphi 0, %s27
      %s30 = sphi 0, %s28
      %s31 = sphi 0, %s29
      %s41 = sphi 0, %s43
      %s44 = sphi 0, %s41
      %s45 = sphi 0, %s44
      %s61 = sphi 0, %s45
      %s67 = sphi 0, %s69
      %s70 = sphi 0, %s67
      %s71 = sphi 0, %s70
      %s87 = sphi 0, %s71
      %s93 = sphi 0, %s95
      %s96 = sphi 0, %s93
      %s97 = sphi 0, %s96
      %s113 = sphi 0, %s97
      %s119 = sphi 0, %s121
      %s122 = sphi 0, %s119
      %s123 = sphi 0, %s122
      %s139 = sphi 0, %s123
      %s143 = sphi 0, %s143
      %s145 = sphi 0, %s143
      %s146 = sphi 0, %s145
      %s160 = sphi 0, %s146
      %s166 = sphi 0, %s168
      %s169 = sphi 0, %s166
      %s170 = sphi 0, %s169
      %s186 = sphi 0, %s170
    $region4: #{tpu_custom_call.1} parent=1 // loop_header_branch
      %22 = sbr.rel (%p20) target = $region8
    $region5: #{tpu_custom_call.1} parent=1 // loop_body
      %s24 = ssub.s32 %s19, 1
      %s25 = ssub.s32 %s19, 2
      %s32 = sadd.s32 1, %s27
      %p33 = scmp.ge.s32.totalorder %s32, 2
      %s34 = scalar_select %p33, 0, %s32
      %s35 = sadd.s32 1, %s26
      %s36 = scalar_select %p33, %s35, %s26
      %p37 = scmp.ge.s32.totalorder %s36, 1
      %s38 = scalar_select %p37, 0, %s36
      %s39 = ssub.s32 %s26, %s38
      %p40 = scmp.eq.s32.totalorder %s39, 0
      %s42 = sadd.s32 %s41, 1
      %s43 = scalar_select %p40, %s41, %s42
      %p46 = pneg %p40
      %p47 = scmp.eq.s32.totalorder %s19, 1
      %p48 = por %p46, %p47
      %p49 = scmp.ne.s32.totalorder %s41, %s44
      %p50 = scmp.eq.s32.totalorder %s19, 0
      %p51 = por %p49, %p50
      %p52 = scmp.ne.s32.totalorder %s41, %s44
      %p53 = scmp.eq.s32.totalorder %s24, 1
      %p54 = por %p52, %p53
      %p55 = scmp.ne.s32.totalorder %s44, %s45
      %p56 = scmp.eq.s32.totalorder %s24, 0
      %p57 = por %p55, %p56
      %p58 = scmp.ne.s32.totalorder %s44, %s45
      %p59 = scmp.eq.s32.totalorder %s25, 1
      %p60 = por %p58, %p59
      %p62 = scmp.ne.s32.totalorder %s45, %s61
      %p63 = scmp.eq.s32.totalorder %s25, 0
      %p64 = por %p62, %p63
      %s65 = ssub.s32 %s27, %s34
      %p66 = scmp.eq.s32.totalorder %s65, 0
      %s68 = sadd.s32 %s67, 1
      %s69 = scalar_select %p66, %s67, %s68
      %p72 = pneg %p66
      %p73 = scmp.eq.s32.totalorder %s19, 1
      %p74 = por %p72, %p73
      %p75 = scmp.ne.s32.totalorder %s67, %s70
      %p76 = scmp.eq.s32.totalorder %s19, 0
      %p77 = por %p75, %p76
      %p78 = scmp.ne.s32.totalorder %s67, %s70
      %p79 = scmp.eq.s32.totalorder %s24, 1
      %p80 = por %p78, %p79
      %p81 = scmp.ne.s32.totalorder %s70, %s71
      %p82 = scmp.eq.s32.totalorder %s24, 0
      %p83 = por %p81, %p82
      %p84 = scmp.ne.s32.totalorder %s70, %s71
      %p85 = scmp.eq.s32.totalorder %s25, 1
      %p86 = por %p84, %p85
      %p88 = scmp.ne.s32.totalorder %s71, %s87
      %p89 = scmp.eq.s32.totalorder %s25, 0
      %p90 = por %p88, %p89
      %s91 = ssub.s32 %s27, %s34
      %p92 = scmp.eq.s32.totalorder %s91, 0
      %s94 = sadd.s32 %s93, 1
      %s95 = scalar_select %p92, %s93, %s94
      %p98 = pneg %p92
      %p99 = scmp.eq.s32.totalorder %s19, 1
      %p100 = por %p98, %p99
      %p101 = scmp.ne.s32.totalorder %s93, %s96
      %p102 = scmp.eq.s32.totalorder %s19, 0
      %p103 = por %p101, %p102
      %p104 = scmp.ne.s32.totalorder %s93, %s96
      %p105 = scmp.eq.s32.totalorder %s24, 1
      %p106 = por %p104, %p105
      %p107 = scmp.ne.s32.totalorder %s96, %s97
      %p108 = scmp.eq.s32.totalorder %s24, 0
      %p109 = por %p107, %p108
      %p110 = scmp.ne.s32.totalorder %s96, %s97
      %p111 = scmp.eq.s32.totalorder %s25, 1
      %p112 = por %p110, %p111
      %p114 = scmp.ne.s32.totalorder %s97, %s113
      %p115 = scmp.eq.s32.totalorder %s25, 0
      %p116 = por %p114, %p115
      %s117 = ssub.s32 %s27, %s34
      %p118 = scmp.eq.s32.totalorder %s117, 0
      %s120 = sadd.s32 %s119, 1
      %s121 = scalar_select %p118, %s119, %s120
      %p124 = pneg %p118
      %p125 = scmp.eq.s32.totalorder %s19, 1
      %p126 = por %p124, %p125
      %p127 = scmp.ne.s32.totalorder %s119, %s122
      %p128 = scmp.eq.s32.totalorder %s19, 0
      %p129 = por %p127, %p128
      %p130 = scmp.ne.s32.totalorder %s119, %s122
      %p131 = scmp.eq.s32.totalorder %s24, 1
      %p132 = por %p130, %p131
      %p133 = scmp.ne.s32.totalorder %s122, %s123
      %p134 = scmp.eq.s32.totalorder %s24, 0
      %p135 = por %p133, %p134
      %p136 = scmp.ne.s32.totalorder %s122, %s123
      %p137 = scmp.eq.s32.totalorder %s25, 1
      %p138 = por %p136, %p137
      %p140 = scmp.ne.s32.totalorder %s123, %s139
      %p141 = scmp.eq.s32.totalorder %s25, 0
      %p142 = por %p140, %p141
      %s144 = sadd.s32 %s143, 1
      %p147 = scmp.eq.s32.totalorder %s19, 1
      %p148 = scmp.ne.s32.totalorder %s143, %s145
      %p149 = scmp.eq.s32.totalorder %s19, 0
      %p150 = por %p148, %p149
      %p151 = scmp.ne.s32.totalorder %s143, %s145
      %p152 = scmp.eq.s32.totalorder %s24, 1
      %p153 = por %p151, %p152
      %p154 = scmp.ne.s32.totalorder %s145, %s146
      %p155 = scmp.eq.s32.totalorder %s24, 0
      %p156 = por %p154, %p155
      %p157 = scmp.ne.s32.totalorder %s145, %s146
      %p158 = scmp.eq.s32.totalorder %s25, 1
      %p159 = por %p157, %p158
      %p161 = scmp.ne.s32.totalorder %s146, %s160
      %p162 = scmp.eq.s32.totalorder %s25, 0
      %p163 = por %p161, %p162
      %s164 = ssub.s32 %s26, %s38
      %p165 = scmp.eq.s32.totalorder %s164, 0
      %s167 = sadd.s32 %s166, 1
      %s168 = scalar_select %p165, %s166, %s167
      %p171 = pneg %p165
      %p172 = scmp.eq.s32.totalorder %s19, 1
      %p173 = por %p171, %p172
      %p174 = scmp.ne.s32.totalorder %s166, %s169
      %p175 = scmp.eq.s32.totalorder %s19, 0
      %p176 = por %p174, %p175
      %p177 = scmp.ne.s32.totalorder %s166, %s169
      %p178 = scmp.eq.s32.totalorder %s24, 1
      %p179 = por %p177, %p178
      %p180 = scmp.ne.s32.totalorder %s169, %s170
      %p181 = scmp.eq.s32.totalorder %s24, 0
      %p182 = por %p180, %p181
      %p183 = scmp.ne.s32.totalorder %s169, %s170
      %p184 = scmp.eq.s32.totalorder %s25, 1
      %p185 = por %p183, %p184
      %p187 = scmp.ne.s32.totalorder %s170, %s186
      %p188 = scmp.eq.s32.totalorder %s25, 0
      %p189 = por %p187, %p188
      %p190 = scmp.le.s32.totalorder 1, %s19
      %p191 = scmp.lt.s32.totalorder %s19, 3
      %p192 = pnand %p190, %p191
      %p193 = pneg %p192
      // Predicated region
      $region9: #{tpu_custom_call.1} parent=5 // pred_check
        _
      $region10: #{tpu_custom_call.1} parent=5 // pred_check_branch
        %195 = sbr.rel (%p192) target = $region12
      $region11: #{tpu_custom_call.1} parent=5 // pred_region
        %s196 = ssub.s32 %s19, 1
        // Predicated region
        $region13: #{tpu_custom_call.1} parent=11 // pred_check
          %p197 = pneg %p57
        $region14: #{tpu_custom_call.1} parent=11 // pred_check_branch
          %199 = sbr.rel (%p197) target = $region16
        $region15: #{tpu_custom_call.1} parent=11 // pred_region
          %s200 = smul.u32 2, %s28
          %s202 = ssub.s32 256, 256
          %203 = vsyncadd [#allocation4], %s202
          %s204 = smul.addr %s200, 128
          %s205 = scalar_lea.hbm %s0, %s204
          %s206 = sshll.u32 [#allocation3], 4
          %s207 = int_to_ptr.vmem [resolvable:$true] %s206
          %212 = dma.hbm_to_vmem [thread:$0]  %s205, 256, %s207, [#allocation4], 128, 128, 8
        $region16: #{tpu_custom_call.1} parent=11 // pred_fallthru
          _
        // Predicated region
        $region17: #{tpu_custom_call.1} parent=11 // pred_check
          %p213 = pneg %p156
        $region18: #{tpu_custom_call.1} parent=11 // pred_check_branch
          %215 = sbr.rel (%p213) target = $region20
        $region19: #{tpu_custom_call.1} parent=11 // pred_region
          %s217 = ssub.s32 16, 16
          %218 = vsyncadd [#allocation10], %s217
          %s220 = sshll.u32 [#allocation11], 4
          %s221 = int_to_ptr.vmem [resolvable:$true] %s220
          %223 = dma.hbm_to_vmem [thread:$0]  %s4, 16, %s221, [#allocation10]
        $region20: #{tpu_custom_call.1} parent=11 // pred_fallthru
          _
      $region12: #{tpu_custom_call.1} parent=5 // pred_fallthru
        _
      %p224 = scmp.lt.s32.totalorder %s19, 2
      // Predicated region
      $region21: #{tpu_custom_call.1} parent=5 // pred_check
        %p225 = pneg %p224
      $region22: #{tpu_custom_call.1} parent=5 // pred_check_branch
        %227 = sbr.rel (%p225) target = $region24
      $region23: #{tpu_custom_call.1} parent=5 // pred_region
        // Predicated region
        $region25: #{tpu_custom_call.1} parent=23 // pred_check
          %p228 = pneg %p77
        $region26: #{tpu_custom_call.1} parent=23 // pred_check_branch
          %230 = sbr.rel (%p228) target = $region28
        $region27: #{tpu_custom_call.1} parent=23 // pred_region
          %s231 = sand.u32 %s19, 1
          %s232 = scalar_lea.sflag [#allocation7], %s231
          %s233 = sand.u32 %s67, 1
          %s234 = smul.addr %s233, 256
          %s235 = scalar_lea.vmem [#allocation6], %s234
          %s236 = smul.u32 2, %s27
          %s238 = ssub.s32 4096, 4096
          %239 = vsyncadd %s232, %s238
          %s240 = smul.addr %s236, 128
          %s241 = scalar_lea.hbm %s1, %s240
          %s242 = sshll.u32 %s235, 4
          %s243 = int_to_ptr.vmem [resolvable:$true] %s242
          %248 = dma.hbm_to_vmem [thread:$0]  %s241, 4096, %s243, %s232, 512, 256, 16
        $region28: #{tpu_custom_call.1} parent=23 // pred_fallthru
          _
        // Predicated region
        $region29: #{tpu_custom_call.1} parent=23 // pred_check
          %p249 = pneg %p103
        $region30: #{tpu_custom_call.1} parent=23 // pred_check_branch
          %251 = sbr.rel (%p249) target = $region32
        $region31: #{tpu_custom_call.1} parent=23 // pred_region
          %s252 = sand.u32 %s19, 1
          %s253 = scalar_lea.sflag [#allocation7], %s252
          %s254 = sand.u32 %s93, 1
          %s255 = smul.addr %s254, 2
          %s256 = scalar_lea.vmem [#allocation8], %s255
          %s257 = smul.u32 2, %s27
          %s259 = ssub.s32 32, 32
          %260 = vsyncadd %s253, %s259
          %s261 = smul.addr %s257, 16
          %s262 = scalar_lea.hbm %s2, %s261
          %s264 = sshll.u32 %s256, 4
          %s265 = int_to_ptr.vmem [resolvable:$true] %s264
          %267 = dma.hbm_to_vmem [thread:$0]  %s262, 32, %s265, %s253
        $region32: #{tpu_custom_call.1} parent=23 // pred_fallthru
          _
        // Predicated region
        $region33: #{tpu_custom_call.1} parent=23 // pred_check
          %p268 = pneg %p129
        $region34: #{tpu_custom_call.1} parent=23 // pred_check_branch
          %270 = sbr.rel (%p268) target = $region36
        $region35: #{tpu_custom_call.1} parent=23 // pred_region
          %s271 = sand.u32 %s19, 1
          %s272 = scalar_lea.sflag [#allocation10], %s271
          %s273 = sand.u32 %s119, 1
          %s274 = smul.addr %s273, 256
          %s275 = scalar_lea.vmem [#allocation9], %s274
          %s276 = smul.u32 32, %s27
          %s278 = ssub.s32 4096, 4096
          %279 = vsyncadd %s272, %s278
          %s280 = smul.addr %s276, 128
          %s281 = scalar_lea.hbm %s3, %s280
          %s282 = sshll.u32 %s275, 4
          %s283 = int_to_ptr.vmem [resolvable:$true] %s282
          %288 = dma.hbm_to_vmem [thread:$0]  %s281, 4096, %s283, %s272, 128, 128, 8
        $region36: #{tpu_custom_call.1} parent=23 // pred_fallthru
          _
      $region24: #{tpu_custom_call.1} parent=5 // pred_fallthru
        _
      %p289 = scmp.le.s32.totalorder 1, %s19
      %p290 = scmp.lt.s32.totalorder %s19, 3
      %p291 = pnand %p289, %p290
      %p292 = pneg %p291
      // Predicated region
      $region37: #{tpu_custom_call.1} parent=5 // pred_check
        _
      $region38: #{tpu_custom_call.1} parent=5 // pred_check_branch
        %294 = sbr.rel (%p291) target = $region40
      $region39: #{tpu_custom_call.1} parent=5 // pred_region
        %s295 = ssub.s32 %s19, 1
        // Predicated region
        $region41: #{tpu_custom_call.1} parent=39 // pred_check
          %p296 = pneg %p57
        $region42: #{tpu_custom_call.1} parent=39 // pred_check_branch
          %298 = sbr.rel (%p296) target = $region44
        $region43: #{tpu_custom_call.1} parent=39 // pred_region
          %299 = dma.done [#allocation4], 256
        $region44: #{tpu_custom_call.1} parent=39 // pred_fallthru
          _
        %s300 = sand.u32 %s24, 1
        %s301 = scalar_lea.sflag [#allocation7], %s300
        %s302 = sand.u32 %s70, 1
        %s303 = smul.addr %s302, 256
        %s304 = scalar_lea.vmem [#allocation6], %s303
        // Predicated region
        $region45: #{tpu_custom_call.1} parent=39 // pred_check
          %p305 = pneg %p83
        $region46: #{tpu_custom_call.1} parent=39 // pred_check_branch
          %307 = sbr.rel (%p305) target = $region48
        $region47: #{tpu_custom_call.1} parent=39 // pred_region
          %308 = dma.done %s301, 4096
        $region48: #{tpu_custom_call.1} parent=39 // pred_fallthru
          _
        %s309 = sand.u32 %s24, 1
        %s310 = scalar_lea.sflag [#allocation7], %s309
        %s311 = sand.u32 %s96, 1
        %s312 = smul.addr %s311, 2
        %s313 = scalar_lea.vmem [#allocation8], %s312
        // Predicated region
        $region49: #{tpu_custom_call.1} parent=39 // pred_check
          %p314 = pneg %p109
        $region50: #{tpu_custom_call.1} parent=39 // pred_check_branch
          %316 = sbr.rel (%p314) target = $region52
        $region51: #{tpu_custom_call.1} parent=39 // pred_region
          %317 = dma.done %s310, 32
        $region52: #{tpu_custom_call.1} parent=39 // pred_fallthru
          _
        %s318 = sand.u32 %s24, 1
        %s319 = scalar_lea.sflag [#allocation10], %s318
        %s320 = sand.u32 %s122, 1
        %s321 = smul.addr %s320, 256
        %s322 = scalar_lea.vmem [#allocation9], %s321
        // Predicated region
        $region53: #{tpu_custom_call.1} parent=39 // pred_check
          %p323 = pneg %p135
        $region54: #{tpu_custom_call.1} parent=39 // pred_check_branch
          %325 = sbr.rel (%p323) target = $region56
        $region55: #{tpu_custom_call.1} parent=39 // pred_region
          %326 = dma.done %s319, 4096
        $region56: #{tpu_custom_call.1} parent=39 // pred_fallthru
          _
        // Predicated region
        $region57: #{tpu_custom_call.1} parent=39 // pred_check
          %p327 = pneg %p156
        $region58: #{tpu_custom_call.1} parent=39 // pred_check_branch
          %329 = sbr.rel (%p327) target = $region60
        $region59: #{tpu_custom_call.1} parent=39 // pred_region
          %330 = dma.done [#allocation10], 16
        $region60: #{tpu_custom_call.1} parent=39 // pred_fallthru
          _
        %p331 = pneg %p57
        %p332 = pneg %p54
        %s333 = sand.u32 %s24, 1
        %s334 = scalar_lea.sflag [#allocation7], %s333
        %s335 = sand.u32 %s70, 1
        %s336 = smul.addr %s335, 256
        %s337 = scalar_lea.vmem [#allocation6], %s336
        %p338 = pneg %p83
        %p339 = pneg %p80
        %s340 = sand.u32 %s24, 1
        %s341 = scalar_lea.sflag [#allocation7], %s340
        %s342 = sand.u32 %s96, 1
        %s343 = smul.addr %s342, 2
        %s344 = scalar_lea.vmem [#allocation8], %s343
        %p345 = pneg %p109
        %p346 = pneg %p106
        %s347 = sand.u32 %s24, 1
        %s348 = scalar_lea.sflag [#allocation10], %s347
        %s349 = sand.u32 %s122, 1
        %s350 = smul.addr %s349, 256
        %s351 = scalar_lea.vmem [#allocation9], %s350
        %p352 = pneg %p135
        %p353 = pneg %p132
        %p354 = pneg %p156
        %p355 = pneg %p153
        %p356 = pneg %p182
        %p357 = pneg %p179
        %s358 = smul.u32 2, %s28
        %s359 = smul.u32 2, %s29
        %s360 = smul.u32 2, %s29
        %s361 = smul.u32 32, %s29
        %s362 = smul.u32 2, %s28
        %p364 = scmp.eq.s32.totalorder %s29, 0
        // Predicated region
        $region61: #{tpu_custom_call.1} parent=39 // pred_check
          %p365 = pneg %p364
        $region62: #{tpu_custom_call.1} parent=39 // pred_check_branch
          %367 = sbr.rel (%p365) target = $region64
        $region63: #{tpu_custom_call.1} parent=39 // pred_region
          %368 = vst [vmem:[#allocation2] sm:$0xff] 0.0
          %369 = vst [vmem:[#allocation2 + $0x8] sm:$0xff] 0.0
        $region64: #{tpu_custom_call.1} parent=39 // pred_fallthru
          _
        %v370 = vld [vmem:[#allocation3] sm:$0xff]
        %v371 = vld [vmem:[#allocation3 + $0x8] sm:$0xff]
        %v372 = vpack.c.bf16 %v371, %v370
        %v373 = vld [vmem:[%s304] sm:$0xff]
        %v374 = vld [vmem:[%s304 + $0x8] sm:$0xff]
        %v375 = vld [vmem:[%s304 + $0x10] sm:$0xff]
        %v376 = vld [vmem:[%s304 + $0x18] sm:$0xff]
        %v377 = vld [vmem:[%s304 + $0x20] sm:$0xff]
        %v378 = vld [vmem:[%s304 + $0x28] sm:$0xff]
        %v379 = vld [vmem:[%s304 + $0x30] sm:$0xff]
        %v380 = vld [vmem:[%s304 + $0x38] sm:$0xff]
        %v381 = vld [vmem:[%s304 + $0x40] sm:$0xff]
        %v382 = vld [vmem:[%s304 + $0x48] sm:$0xff]
        %v383 = vld [vmem:[%s304 + $0x50] sm:$0xff]
        %v384 = vld [vmem:[%s304 + $0x58] sm:$0xff]
        %v385 = vld [vmem:[%s304 + $0x60] sm:$0xff]
        %v386 = vld [vmem:[%s304 + $0x68] sm:$0xff]
        %v387 = vld [vmem:[%s304 + $0x70] sm:$0xff]
        %v388 = vld [vmem:[%s304 + $0x78] sm:$0xff]
        %v389 = vld [vmem:[%s304 + $0x80] sm:$0xff]
        %v390 = vld [vmem:[%s304 + $0x88] sm:$0xff]
        %v391 = vld [vmem:[%s304 + $0x90] sm:$0xff]
        %v392 = vld [vmem:[%s304 + $0x98] sm:$0xff]
        %v393 = vld [vmem:[%s304 + $0xa0] sm:$0xff]
        %v394 = vld [vmem:[%s304 + $0xa8] sm:$0xff]
        %v395 = vld [vmem:[%s304 + $0xb0] sm:$0xff]
        %v396 = vld [vmem:[%s304 + $0xb8] sm:$0xff]
        %v397 = vld [vmem:[%s304 + $0xc0] sm:$0xff]
        %v398 = vld [vmem:[%s304 + $0xc8] sm:$0xff]
        %v399 = vld [vmem:[%s304 + $0xd0] sm:$0xff]
        %v400 = vld [vmem:[%s304 + $0xd8] sm:$0xff]
        %v401 = vld [vmem:[%s304 + $0xe0] sm:$0xff]
        %v402 = vld [vmem:[%s304 + $0xe8] sm:$0xff]
        %v403 = vld [vmem:[%s304 + $0xf0] sm:$0xff]
        %v404 = vld [vmem:[%s304 + $0xf8] sm:$0xff]
        %v405 = vpack.c.bf16 %v375, %v373
        %v406 = vpack.c.bf16 %v376, %v374
        %v407 = vpack.c.bf16 %v379, %v377
        %v408 = vpack.c.bf16 %v380, %v378
        %v409 = vpack.c.bf16 %v383, %v381
        %v410 = vpack.c.bf16 %v384, %v382
        %v411 = vpack.c.bf16 %v387, %v385
        %v412 = vpack.c.bf16 %v388, %v386
        %v413 = vpack.c.bf16 %v391, %v389
        %v414 = vpack.c.bf16 %v392, %v390
        %v415 = vpack.c.bf16 %v395, %v393
        %v416 = vpack.c.bf16 %v396, %v394
        %v417 = vpack.c.bf16 %v399, %v397
        %v418 = vpack.c.bf16 %v400, %v398
        %v419 = vpack.c.bf16 %v403, %v401
        %v420 = vpack.c.bf16 %v404, %v402
        %v421 = vld [vmem:[%s313] sm:$0x3]
        %v423 = vlaneseq
        %v424 = vshrl.u32 %v423, 7
        %v425 = vsub.s32 0, %v424
        %v426 = vrot.slane %v421, %v425
        %v427 = vlaneseq
        %v428 = vshrl.u32 %v427, 7
        %v429 = vsub.s32 1, %v428
        %v430 = vrot.slane %v421, %v429
        %433 = vmatprep.subr.bf16.mxu0 %v406
        %434 = vmatpush1.bf16.msra.mxu0 %v405
        %435 = vmatprep.subr.bf16.mxu0 %v408
        %436 = vmatpush1.bf16.msra.mxu0 %v407
        %437 = vmatprep.subr.bf16.mxu0 %v410
        %438 = vmatpush1.bf16.msra.mxu0 %v409
        %439 = vmatprep.subr.bf16.mxu0 %v412
        %440 = vmatpush1.bf16.msra.mxu0 %v411
        %441 = vmatprep.subr.bf16.mxu0 %v414
        %442 = vmatpush1.bf16.msra.mxu0 %v413
        %443 = vmatprep.subr.bf16.mxu0 %v416
        %444 = vmatpush1.bf16.msra.mxu0 %v415
        %445 = vmatprep.subr.bf16.mxu0 %v418
        %446 = vmatpush1.bf16.msra.mxu0 %v417
        %447 = vmatprep.subr.bf16.mxu0 %v420
        %448 = vmatpush1.bf16.msra.mxu0 %v419
        %449 = vmatprep.subr.bf16.mxu0 0
        %450 = vmatpush1.bf16.msra.mxu0 0
        %451 = vmatprep.subr.bf16.mxu0 0
        %452 = vmatpush1.bf16.msra.mxu0 0
        %453 = vmatprep.subr.bf16.mxu0 0
        %454 = vmatpush1.bf16.msra.mxu0 0
        %455 = vmatprep.subr.bf16.mxu0 0
        %456 = vmatpush1.bf16.msra.mxu0 0
        %457 = vmatprep.subr.bf16.mxu0 0
        %458 = vmatpush1.bf16.msra.mxu0 0
        %459 = vmatprep.subr.bf16.mxu0 0
        %460 = vmatpush1.bf16.msra.mxu0 0
        %461 = vmatprep.subr.bf16.mxu0 0
        %462 = vmatpush1.bf16.msra.mxu0 0
        %463 = vmatprep.subr.bf16.mxu0 0
        %464 = vmatpush1.bf16.msra.mxu0 0
        %465 = vmatprep.mubr.bf16.mxu0 0
        %466 = vmatmul.mubr.bf16.gmra.mrb[0].mxu0 %v372
        %v467 = vpop.f32.mrb[0].mxu0
        %v468 = vadd.f32 %v426, %v467
        %v469 = vpop.f32.mrb[0].mxu0
        %v470 = vadd.f32 %v430, %v469
        %v471 = vpop.f32.mrb[0].mxu0
        %v472 = vadd.f32 %v426, %v471
        %v473 = vpop.f32.mrb[0].mxu0
        %v474 = vadd.f32 %v430, %v473
        %475 = vdwg.mxu0
        %v476 = vmul.f32 %v468, 0.5
        %v477 = vmul.f32 %v470, 0.5
        %v478 = vmul.f32 %v472, 0.5
        %v479 = vmul.f32 %v474, 0.5
        %v480 = vmul.f32 %v468, 0.70710677
        %v481 = vmul.f32 %v470, 0.70710677
        %v482 = vmul.f32 %v472, 0.70710677
        %v483 = vmul.f32 %v474, 0.70710677
        %v484 = verf.f32.pop %v480
        %v485 = verf.f32.pop %v481
        %v486 = verf.f32.pop %v482
        %v487 = verf.f32.pop %v483
        %v488 = vadd.f32 %v484, 1.0
        %v489 = vadd.f32 %v485, 1.0
        %v490 = vadd.f32 %v486, 1.0
        %v491 = vadd.f32 %v487, 1.0
        %v492 = vmul.f32 %v476, %v488
        %v493 = vmul.f32 %v477, %v489
        %v494 = vmul.f32 %v478, %v490
        %v495 = vmul.f32 %v479, %v491
        %v496 = vld [vmem:[#allocation2] sm:$0xff]
        %v497 = vld [vmem:[#allocation2 + $0x8] sm:$0xff]
        %v498 = vpack.c.bf16 %v494, %v492
        %v499 = vpack.c.bf16 %v495, %v493
        %v500 = vld [vmem:[%s322] sm:$0xff]
        %v501 = vld [vmem:[%s322 + $0x8] sm:$0xff]
        %v502 = vld [vmem:[%s322 + $0x10] sm:$0xff]
        %v503 = vld [vmem:[%s322 + $0x18] sm:$0xff]
        %v504 = vld [vmem:[%s322 + $0x20] sm:$0xff]
        %v505 = vld [vmem:[%s322 + $0x28] sm:$0xff]
        %v506 = vld [vmem:[%s322 + $0x30] sm:$0xff]
        %v507 = vld [vmem:[%s322 + $0x38] sm:$0xff]
        %v508 = vld [vmem:[%s322 + $0x40] sm:$0xff]
        %v509 = vld [vmem:[%s322 + $0x48] sm:$0xff]
        %v510 = vld [vmem:[%s322 + $0x50] sm:$0xff]
        %v511 = vld [vmem:[%s322 + $0x58] sm:$0xff]
        %v512 = vld [vmem:[%s322 + $0x60] sm:$0xff]
        %v513 = vld [vmem:[%s322 + $0x68] sm:$0xff]
        %v514 = vld [vmem:[%s322 + $0x70] sm:$0xff]
        %v515 = vld [vmem:[%s322 + $0x78] sm:$0xff]
        %v516 = vld [vmem:[%s322 + $0x80] sm:$0xff]
        %v517 = vld [vmem:[%s322 + $0x88] sm:$0xff]
        %v518 = vld [vmem:[%s322 + $0x90] sm:$0xff]
        %v519 = vld [vmem:[%s322 + $0x98] sm:$0xff]
        %v520 = vld [vmem:[%s322 + $0xa0] sm:$0xff]
        %v521 = vld [vmem:[%s322 + $0xa8] sm:$0xff]
        %v522 = vld [vmem:[%s322 + $0xb0] sm:$0xff]
        %v523 = vld [vmem:[%s322 + $0xb8] sm:$0xff]
        %v524 = vld [vmem:[%s322 + $0xc0] sm:$0xff]
        %v525 = vld [vmem:[%s322 + $0xc8] sm:$0xff]
        %v526 = vld [vmem:[%s322 + $0xd0] sm:$0xff]
        %v527 = vld [vmem:[%s322 + $0xd8] sm:$0xff]
        %v528 = vld [vmem:[%s322 + $0xe0] sm:$0xff]
        %v529 = vld [vmem:[%s322 + $0xe8] sm:$0xff]
        %v530 = vld [vmem:[%s322 + $0xf0] sm:$0xff]
        %v531 = vld [vmem:[%s322 + $0xf8] sm:$0xff]
        %v532 = vpack.c.bf16 %v501, %v500
        %v533 = vpack.c.bf16 %v503, %v502
        %v534 = vpack.c.bf16 %v505, %v504
        %v535 = vpack.c.bf16 %v507, %v506
        %v536 = vpack.c.bf16 %v509, %v508
        %v537 = vpack.c.bf16 %v511, %v510
        %v538 = vpack.c.bf16 %v513, %v512
        %v539 = vpack.c.bf16 %v515, %v514
        %v540 = vpack.c.bf16 %v517, %v516
        %v541 = vpack.c.bf16 %v519, %v518
        %v542 = vpack.c.bf16 %v521, %v520
        %v543 = vpack.c.bf16 %v523, %v522
        %v544 = vpack.c.bf16 %v525, %v524
        %v545 = vpack.c.bf16 %v527, %v526
        %v546 = vpack.c.bf16 %v529, %v528
        %v547 = vpack.c.bf16 %v531, %v530
        %548 = vmatprep.subr.bf16.mxu0 0
        %549 = vmatpush1.bf16.msra.mxu0 %v532
        %550 = vmatprep.subr.bf16.mxu0 0
        %551 = vmatpush1.bf16.msra.mxu0 %v533
        %552 = vmatprep.subr.bf16.mxu0 0
        %553 = vmatpush1.bf16.msra.mxu0 %v534
        %554 = vmatprep.subr.bf16.mxu0 0
        %555 = vmatpush1.bf16.msra.mxu0 %v535
        %556 = vmatprep.subr.bf16.mxu0 0
        %557 = vmatpush1.bf16.msra.mxu0 %v536
        %558 = vmatprep.subr.bf16.mxu0 0
        %559 = vmatpush1.bf16.msra.mxu0 %v537
        %560 = vmatprep.subr.bf16.mxu0 0
        %561 = vmatpush1.bf16.msra.mxu0 %v538
        %562 = vmatprep.subr.bf16.mxu0 0
        %563 = vmatpush1.bf16.msra.mxu0 %v539
        %564 = vmatprep.subr.bf16.mxu0 0
        %565 = vmatpush1.bf16.msra.mxu0 %v540
        %566 = vmatprep.subr.bf16.mxu0 0
        %567 = vmatpush1.bf16.msra.mxu0 %v541
        %568 = vmatprep.subr.bf16.mxu0 0
        %569 = vmatpush1.bf16.msra.mxu0 %v542
        %570 = vmatprep.subr.bf16.mxu0 0
        %571 = vmatpush1.bf16.msra.mxu0 %v543
        %572 = vmatprep.subr.bf16.mxu0 0
        %573 = vmatpush1.bf16.msra.mxu0 %v544
        %574 = vmatprep.subr.bf16.mxu0 0
        %575 = vmatpush1.bf16.msra.mxu0 %v545
        %576 = vmatprep.subr.bf16.mxu0 0
        %577 = vmatpush1.bf16.msra.mxu0 %v546
        %578 = vmatprep.subr.bf16.mxu0 0
        %579 = vmatpush1.bf16.msra.mxu0 %v547
        %580 = vmatprep.mubr.bf16.mxu0 %v499
        %581 = vmatmul.mubr.bf16.gmra.mrb[0].mxu0 %v498
        %v582 = vpop.f32.mrb[0].mxu0
        %v583 = vadd.f32 0.0, %v582
        %v584 = vpop.f32.mrb[0].mxu0
        %v585 = vpop.f32.mrb[0].mxu0
        %v586 = vadd.f32 0.0, %v585
        %v587 = vpop.f32.mrb[0].mxu0
        %588 = vdwg.mxu0
        %v589 = vadd.f32 %v496, %v583
        %v590 = vadd.f32 %v497, %v586
        %591 = vst [vmem:[#allocation2] sm:$0xff] %v589
        %592 = vst [vmem:[#allocation2 + $0x8] sm:$0xff] %v590
        %p593 = scmp.eq.s32.totalorder %s29, 1
        // Predicated region
        $region65: #{tpu_custom_call.1} parent=39 // pred_check
          %p594 = pneg %p593
        $region66: #{tpu_custom_call.1} parent=39 // pred_check_branch
          %596 = sbr.rel (%p594) target = $region68
        $region67: #{tpu_custom_call.1} parent=39 // pred_region
          %v597 = vld [vmem:[#allocation2] sm:$0xff]
          %v598 = vld [vmem:[#allocation2 + $0x8] sm:$0xff]
          %v599 = vld [vmem:[#allocation11] sm:$0x1]
          %v601 = vlaneseq
          %v602 = vshrl.u32 %v601, 7
          %v603 = vsub.s32 0, %v602
          %v604 = vrot.slane %v599, %v603
          %v606 = vadd.f32 %v597, %v604
          %v607 = vadd.f32 %v598, %v604
          %608 = vst [vmem:[#allocation12] sm:$0xff] %v606
          %609 = vst [vmem:[#allocation12 + $0x8] sm:$0xff] %v607
        $region68: #{tpu_custom_call.1} parent=39 // pred_fallthru
          _
        // Predicated region
        $region69: #{tpu_custom_call.1} parent=39 // pred_check
          %p610 = pneg %p179
        $region70: #{tpu_custom_call.1} parent=39 // pred_check_branch
          %612 = sbr.rel (%p610) target = $region72
        $region71: #{tpu_custom_call.1} parent=39 // pred_region
          %s613 = smul.u32 2, %s28
          %s615 = ssub.s32 256, 256
          %616 = vsyncadd [#allocation5], %s615
          %s617 = smul.addr %s613, 128
          %s618 = scalar_lea.hbm %s5, %s617
          %s619 = sshll.u32 [#allocation12], 4
          %s620 = int_to_ptr.vmem [resolvable:$true] %s619
          %625 = dma.vmem_to_hbm [thread:$0]  %s620, 256, %s618, [#allocation5], 128, 128, 8
        $region72: #{tpu_custom_call.1} parent=39 // pred_fallthru
          _
        // Predicated region
        $region73: #{tpu_custom_call.1} parent=39 // pred_check
          %p626 = pneg %p179
        $region74: #{tpu_custom_call.1} parent=39 // pred_check_branch
          %628 = sbr.rel (%p626) target = $region76
        $region75: #{tpu_custom_call.1} parent=39 // pred_region
          %629 = dma.done [#allocation5], 256
        $region76: #{tpu_custom_call.1} parent=39 // pred_fallthru
          _
      $region40: #{tpu_custom_call.1} parent=5 // pred_fallthru
        _
      %p630 = scmp.le.s32.totalorder 2, %s19
      // Predicated region
      $region77: #{tpu_custom_call.1} parent=5 // pred_check
        %p631 = pneg %p630
      $region78: #{tpu_custom_call.1} parent=5 // pred_check_branch
        %633 = sbr.rel (%p631) target = $region80
      $region79: #{tpu_custom_call.1} parent=5 // pred_region
        %s634 = ssub.s32 %s19, 2
      $region80: #{tpu_custom_call.1} parent=5 // pred_fallthru
        _
    $region6: #{tpu_custom_call.1} parent=1 // loop_footer
      %s23 = sadd.s32 1, %s19
    $region7: #{tpu_custom_call.1} parent=1 // loop_footer_branch
      %18 = sbr.rel target = $region3
    $region8: #{tpu_custom_call.1} parent=1 // loop_exit
      _
    %635 = vsyncpa [#allocation4], 1
    %s636 = scalar_lea.sflag [#allocation4], 1
    %637 = vsyncpa %s636, 1
    %638 = vsyncpa [#allocation7], 1
    %s639 = scalar_lea.sflag [#allocation7], 1
    %640 = vsyncpa %s639, 1
    %641 = vsyncpa [#allocation10], 1
    %s642 = scalar_lea.sflag [#allocation10], 1
    %643 = vsyncpa %s642, 1
    %644 = vsyncpa [#allocation5], 1
    %s645 = scalar_lea.sflag [#allocation5], 1
    %646 = vsyncpa %s645, 1

</llo_original>
